<compile_context>
chip_gen: v6e
topology: v6e:2x2x1
jax: 0.10.0
libtpu: 0.0.40
codegen_flags: <defaults>
</compile_context>

<pallas_src>
import functools
import math

import jax
import jax.numpy as jnp
from jax.experimental import pallas as pl
from jax.experimental.pallas import tpu as pltpu


def _residual_ffn_kernel(x_ref, gamma_ref, beta_ref, w1_ref, b1_ref,
                         w2_ref, b2_ref, out_ref, *, eps: float, inv_nm1: float):
    """One row tile: out = x + FFN(LayerNorm(x)).  x_ref: (TM, D)."""
    x = x_ref[...].astype(jnp.float32)                          # (TM, D)

    # --- LayerNormalization (matches torch: unbiased std, divide by std+eps) ---
    mean = jnp.mean(x, axis=-1, keepdims=True)                  # (TM, 1)
    xc = x - mean
    var = jnp.sum(xc * xc, axis=-1, keepdims=True) * inv_nm1    # ddof=1
    inv = pl.reciprocal(jnp.sqrt(var) + eps, approx=True)       # EUP slot
    xn = gamma_ref[...] * (xc * inv) + beta_ref[...]            # (TM, D)

    # --- FeedForward sublayer: ReLU(xn @ W1 + b1) @ W2 + b2 ---
    # Weights are already (in, out) and bf16; f32 accumulation on the MXU.
    h = jnp.dot(xn.astype(jnp.bfloat16), w1_ref[...],
                preferred_element_type=jnp.float32) + b1_ref[...]   # (TM, d_ff)
    h = jnp.maximum(h, 0.0)
    y = jnp.dot(h.astype(jnp.bfloat16), w2_ref[...],
                preferred_element_type=jnp.float32) + b2_ref[...]   # (TM, D)

    # TODO(synk): nn.Dropout omitted (eval / inference semantics => identity).

    # --- Residual add (exact f32 x), single lane-dense store ---
    out_ref[...] = (x + y).astype(out_ref.dtype)


def _pick_row_tile(m: int) -> int:
    for tm in (1024, 512, 256, 128, 64, 32, 16, 8):
        if m % tm == 0:
            return tm
    return m


def residual_connection_ffn(x, gamma, beta, w1, b1, w2, b2, *, eps: float = 1e-6):
    """ResidualConnection with a FeedForwardBlock sublayer.

    x:  (B, S, D)
    w1: (d_ff, D), b1: (d_ff,)   -- PyTorch nn.Linear convention W:[out, in]
    w2: (D, d_ff), b2: (D,)
    """
    B, S, D = x.shape
    d_ff = w1.shape[0]
    M = B * S
    TM = _pick_row_tile(M)

    x2d = x.reshape(M, D)

    # Pre-transpose once in the wrapper (no in-kernel XLU transposes) and cast
    # the matmul weights to bf16 (halves resident VMEM, feeds the bf16 MXU).
    w1t = jnp.asarray(w1.T, dtype=jnp.bfloat16)          # (D, d_ff)
    w2t = jnp.asarray(w2.T, dtype=jnp.bfloat16)          # (d_ff, D)
    gamma2d = gamma.reshape(1, D).astype(jnp.float32)
    beta2d = beta.reshape(1, D).astype(jnp.float32)
    b1_2d = b1.reshape(1, d_ff).astype(jnp.float32)
    b2_2d = b2.reshape(1, D).astype(jnp.float32)

    kernel = functools.partial(_residual_ffn_kernel,
                               eps=eps, inv_nm1=1.0 / (D - 1))

    row_spec = pl.BlockSpec((TM, D), lambda i: (i, 0))
    # Whole-array residents in VMEM: constant across the grid, no double buffer.
    resident = pl.BlockSpec(memory_space=pltpu.MemorySpace.VMEM)

    out2d = pl.pallas_call(
        kernel,
        out_shape=jax.ShapeDtypeStruct((M, D), x.dtype),
        grid_spec=pltpu.PrefetchScalarGridSpec(
            num_scalar_prefetch=0,
            grid=(M // TM,),
            in_specs=[row_spec, resident, resident, resident, resident,
                      resident, resident],
            out_specs=row_spec,
        ),
        compiler_params=pltpu.CompilerParams(
            dimension_semantics=("parallel",)),
    )(x2d, gamma2d, beta2d, w1t, b1_2d, w2t, b2_2d)

    return out2d.reshape(B, S, D)


def _reference(x, gamma, beta, w1, b1, w2, b2, eps):
    mean = jnp.mean(x, axis=-1, keepdims=True)
    std = jnp.std(x, axis=-1, keepdims=True, ddof=1)   # torch.std default: unbiased
    xn = gamma * (x - mean) / (std + eps) + beta
    h = jnp.maximum(xn @ w1.T + b1, 0.0)
    y = h @ w2.T + b2
    return x + y


if __name__ == "__main__":
    B, S, D, DFF = 2, 8, 32, 64  # batch, seq_len, d_model, d_ff

    key = jax.random.PRNGKey(0)
    kx, kg, kb, kw1, kb1, kw2, kb2 = jax.random.split(key, 7)

    x = jax.random.normal(kx, (B, S, D), dtype=jnp.float32)

    # LayerNorm params (perturbed around the ones/zeros init so gamma/beta are
    # actually exercised by the test).
    gamma = 1.0 + 0.1 * jax.random.normal(kg, (D,), dtype=jnp.float32)
    beta = 0.1 * jax.random.normal(kb, (D,), dtype=jnp.float32)

    # FeedForwardBlock params, PyTorch nn.Linear convention W:[out, in].
    bnd1 = 1.0 / math.sqrt(D)
    bnd2 = 1.0 / math.sqrt(DFF)
    w1 = jax.random.uniform(kw1, (DFF, D), jnp.float32, -bnd1, bnd1)
    b1 = jax.random.uniform(kb1, (DFF,), jnp.float32, -bnd1, bnd1)
    w2 = jax.random.uniform(kw2, (D, DFF), jnp.float32, -bnd2, bnd2)
    b2 = jax.random.uniform(kb2, (D,), jnp.float32, -bnd2, bnd2)

    out = residual_connection_ffn(x, gamma, beta, w1, b1, w2, b2, eps=1e-6)
    out = jax.block_until_ready(out)

    ref = _reference(x, gamma, beta, w1, b1, w2, b2, 1e-6)
    assert out.shape == x.shape
    # bf16 MXU operands + approx reciprocal => slightly relaxed tolerance.
    max_err = jnp.max(jnp.abs(out - ref))
    assert jnp.allclose(out, ref, atol=2e-2, rtol=2e-2), f"mismatch vs reference, max abs err={max_err}"

    print("KERNEL_OK")
</pallas_src>

<mosaic_0001>
module attributes {stable_mosaic.version = 11 : i64} {
  func.func @_residual_ffn_kernel(%arg0: i32, %arg1: memref<16x32xf32, #tpu.memory_space<vmem>>, %arg2: memref<1x32xf32, #tpu.memory_space<vmem>>, %arg3: memref<1x32xf32, #tpu.memory_space<vmem>>, %arg4: memref<32x64xbf16, #tpu.memory_space<vmem>>, %arg5: memref<1x64xf32, #tpu.memory_space<vmem>>, %arg6: memref<64x32xbf16, #tpu.memory_space<vmem>>, %arg7: memref<1x32xf32, #tpu.memory_space<vmem>>, %arg8: memref<16x32xf32, #tpu.memory_space<vmem>>) attributes {dimension_semantics = [#tpu.dimension_semantics<parallel>], iteration_bounds = array<i64: 1>, scalar_prefetch = 0 : i64, scratch_operands = 0 : i64, tpu.core_type = #tpu.core_type<tc>, window_params = [{transform_indices = @transform_0, window_bounds = array<i64: 16, 32>}, {pipeline_mode = #tpu.pipeline_mode<synchronous>, transform_indices = @transform_1, window_bounds = array<i64: 1, 32>}, {pipeline_mode = #tpu.pipeline_mode<synchronous>, transform_indices = @transform_2, window_bounds = array<i64: 1, 32>}, {pipeline_mode = #tpu.pipeline_mode<synchronous>, transform_indices = @transform_3, window_bounds = array<i64: 32, 64>}, {pipeline_mode = #tpu.pipeline_mode<synchronous>, transform_indices = @transform_4, window_bounds = array<i64: 1, 64>}, {pipeline_mode = #tpu.pipeline_mode<synchronous>, transform_indices = @transform_5, window_bounds = array<i64: 64, 32>}, {pipeline_mode = #tpu.pipeline_mode<synchronous>, transform_indices = @transform_6, window_bounds = array<i64: 1, 32>}, {transform_indices = @transform_7, window_bounds = array<i64: 16, 32>}]} {
    %c0 = arith.constant 0 : index
    %c0_0 = arith.constant 0 : index
    %0 = vector.load %arg1[%c0, %c0_0] : memref<16x32xf32, #tpu.memory_space<vmem>>, vector<16x32xf32>
    %cst = arith.constant dense<0.000000e+00> : vector<16xf32>
    %1 = vector.multi_reduction <add>, %0, %cst [1] : vector<16x32xf32> to vector<16xf32>
    %2 = vector.shape_cast %1 : vector<16xf32> to vector<16x1xf32>
    %cst_1 = arith.constant 3.200000e+01 : f32
    %3 = vector.broadcast %cst_1 : f32 to vector<16x1xf32>
    %4 = arith.divf %2, %3 : vector<16x1xf32>
    %5 = vector.broadcast %4 : vector<16x1xf32> to vector<16x32xf32>
    %6 = arith.subf %0, %5 : vector<16x32xf32>
    %7 = arith.mulf %6, %6 : vector<16x32xf32>
    %cst_2 = arith.constant dense<0.000000e+00> : vector<16xf32>
    %8 = vector.multi_reduction <add>, %7, %cst_2 [1] : vector<16x32xf32> to vector<16xf32>
    %9 = vector.shape_cast %8 : vector<16xf32> to vector<16x1xf32>
    %cst_3 = arith.constant 0.0322580636 : f32
    %10 = vector.broadcast %cst_3 : f32 to vector<16x1xf32>
    %11 = arith.mulf %9, %10 : vector<16x1xf32>
    %12 = math.sqrt %11 : vector<16x1xf32>
    %cst_4 = arith.constant 9.99999997E-7 : f32
    %13 = vector.broadcast %cst_4 : f32 to vector<16x1xf32>
    %14 = arith.addf %12, %13 : vector<16x1xf32>
    %15 = tpu.reciprocal %14 {approx = true} : vector<16x1xf32> -> vector<16x1xf32>
    %c0_5 = arith.constant 0 : index
    %c0_6 = arith.constant 0 : index
    %16 = vector.load %arg2[%c0_5, %c0_6] : memref<1x32xf32, #tpu.memory_space<vmem>>, vector<1x32xf32>
    %17 = vector.broadcast %15 : vector<16x1xf32> to vector<16x32xf32>
    %18 = arith.mulf %6, %17 : vector<16x32xf32>
    %19 = vector.broadcast %16 : vector<1x32xf32> to vector<16x32xf32>
    %20 = arith.mulf %19, %18 : vector<16x32xf32>
    %c0_7 = arith.constant 0 : index
    %c0_8 = arith.constant 0 : index
    %21 = vector.load %arg3[%c0_7, %c0_8] : memref<1x32xf32, #tpu.memory_space<vmem>>, vector<1x32xf32>
    %22 = vector.broadcast %21 : vector<1x32xf32> to vector<16x32xf32>
    %23 = arith.addf %20, %22 : vector<16x32xf32>
    %24 = arith.truncf %23 : vector<16x32xf32> to vector<16x32xbf16>
    %c0_9 = arith.constant 0 : index
    %c0_10 = arith.constant 0 : index
    %25 = vector.load %arg4[%c0_9, %c0_10] : memref<32x64xbf16, #tpu.memory_space<vmem>>, vector<32x64xbf16>
    %cst_11 = arith.constant dense<0.000000e+00> : vector<16x64xf32>
    %26 = tpu.matmul %24, %25, %cst_11 {dimension_numbers = #tpu.dot_dimension_numbers<[1], [0], [0], [1], [0, 0, 1, 1], [], []>} : vector<16x32xbf16>, vector<32x64xbf16>, vector<16x64xf32> -> vector<16x64xf32>
    %c0_12 = arith.constant 0 : index
    %c0_13 = arith.constant 0 : index
    %27 = vector.load %arg5[%c0_12, %c0_13] : memref<1x64xf32, #tpu.memory_space<vmem>>, vector<1x64xf32>
    %28 = vector.broadcast %27 : vector<1x64xf32> to vector<16x64xf32>
    %29 = arith.addf %26, %28 : vector<16x64xf32>
    %cst_14 = arith.constant 0.000000e+00 : f32
    %30 = vector.broadcast %cst_14 : f32 to vector<16x64xf32>
    %31 = arith.maximumf %29, %30 : vector<16x64xf32>
    %32 = arith.truncf %31 : vector<16x64xf32> to vector<16x64xbf16>
    %c0_15 = arith.constant 0 : index
    %c0_16 = arith.constant 0 : index
    %33 = vector.load %arg6[%c0_15, %c0_16] : memref<64x32xbf16, #tpu.memory_space<vmem>>, vector<64x32xbf16>
    %cst_17 = arith.constant dense<0.000000e+00> : vector<16x32xf32>
    %34 = tpu.matmul %32, %33, %cst_17 {dimension_numbers = #tpu.dot_dimension_numbers<[1], [0], [0], [1], [0, 0, 1, 1], [], []>} : vector<16x64xbf16>, vector<64x32xbf16>, vector<16x32xf32> -> vector<16x32xf32>
    %c0_18 = arith.constant 0 : index
    %c0_19 = arith.constant 0 : index
    %35 = vector.load %arg7[%c0_18, %c0_19] : memref<1x32xf32, #tpu.memory_space<vmem>>, vector<1x32xf32>
    %36 = vector.broadcast %35 : vector<1x32xf32> to vector<16x32xf32>
    %37 = arith.addf %34, %36 : vector<16x32xf32>
    %38 = arith.addf %0, %37 : vector<16x32xf32>
    %c0_20 = arith.constant 0 : index
    %c0_21 = arith.constant 0 : index
    %39 = vector.load %arg8[%c0_20, %c0_21] : memref<16x32xf32, #tpu.memory_space<vmem>>, vector<16x32xf32>
    tpu.vector_store %arg8[%c0_20, %c0_21], %38 {strides = array<i32>} : memref<16x32xf32, #tpu.memory_space<vmem>>, vector<16x32xf32>,
    return
  }
  func.func @transform_0(%arg0: i32) -> (i32, i32) {
    %c0_i32 = arith.constant 0 : i32
    %c0_i32_0 = arith.constant 0 : i32
    return %arg0, %c0_i32 : i32, i32
  }
  func.func @transform_1(%arg0: i32) -> (i32, i32) {
    %c0_i32 = arith.constant 0 : i32
    %c0_i32_0 = arith.constant 0 : i32
    %c0_i32_1 = arith.constant 0 : i32
    return %c0_i32, %c0_i32_0 : i32, i32
  }
  func.func @transform_2(%arg0: i32) -> (i32, i32) {
    %c0_i32 = arith.constant 0 : i32
    %c0_i32_0 = arith.constant 0 : i32
    %c0_i32_1 = arith.constant 0 : i32
    return %c0_i32, %c0_i32_0 : i32, i32
  }
  func.func @transform_3(%arg0: i32) -> (i32, i32) {
    %c0_i32 = arith.constant 0 : i32
    %c0_i32_0 = arith.constant 0 : i32
    %c0_i32_1 = arith.constant 0 : i32
    return %c0_i32, %c0_i32_0 : i32, i32
  }
  func.func @transform_4(%arg0: i32) -> (i32, i32) {
    %c0_i32 = arith.constant 0 : i32
    %c0_i32_0 = arith.constant 0 : i32
    %c0_i32_1 = arith.constant 0 : i32
    return %c0_i32, %c0_i32_0 : i32, i32
  }
  func.func @transform_5(%arg0: i32) -> (i32, i32) {
    %c0_i32 = arith.constant 0 : i32
    %c0_i32_0 = arith.constant 0 : i32
    %c0_i32_1 = arith.constant 0 : i32
    return %c0_i32, %c0_i32_0 : i32, i32
  }
  func.func @transform_6(%arg0: i32) -> (i32, i32) {
    %c0_i32 = arith.constant 0 : i32
    %c0_i32_0 = arith.constant 0 : i32
    %c0_i32_1 = arith.constant 0 : i32
    return %c0_i32, %c0_i32_0 : i32, i32
  }
  func.func @transform_7(%arg0: i32) -> (i32, i32) {
    %c0_i32 = arith.constant 0 : i32
    %c0_i32_0 = arith.constant 0 : i32
    return %arg0, %c0_i32 : i32, i32
  }
}

</mosaic_0001>

<llo_original>
// kernel: tpu_custom_call.1
$region0: #{tpu_custom_call.1}
  #allocation0 [shape = 'u32[]', space=smem, size = 0x4, offset = 0x4, fixed_abs, tag = 'smem constant byte address 0x4 - core index']
  #allocation1 [shape = 'u32[144,128]{1,0:T(1,128)}', space=vmem, size = 0x12000, scoped, tag = 'internal scratch']
  %s0 = inlined_call_operand.vmem [shape: f32[16,32], index: 0, kind: input, shape index: {}]
  %s1 = inlined_call_operand.vmem [shape: f32[1,32], index: 1, kind: input, shape index: {}]
  %s2 = inlined_call_operand.vmem [shape: f32[1,32], index: 2, kind: input, shape index: {}]
  %s3 = inlined_call_operand.vmem [shape: bf16[32,64], index: 3, kind: input, shape index: {}]
  %s4 = inlined_call_operand.vmem [shape: f32[1,64], index: 4, kind: input, shape index: {}]
  %s5 = inlined_call_operand.vmem [shape: bf16[64,32], index: 5, kind: input, shape index: {}]
  %s6 = inlined_call_operand.vmem [shape: f32[1,32], index: 6, kind: input, shape index: {}]
  %s7 = inlined_call_operand.hbm [shape: f32[16,32], index: 7, kind: output, shape index: {}]
  %s8 = sld [smem:[#allocation0]]
  $region38: #{tpu_custom_call.1} parent=0
    _
  %s10 = ssub.s32 1, %s8
  %s11 = scalar_select 0, %s10, %s8
  $region1: #{tpu_custom_call.1} parent=0
    #allocation2 [shape = 'u8[8192]{0}', space=vmem, size = 0x2000, scoped, tag = 'output window, operand 0, single buffered']
    #allocation3 [shape = 's32[1]{0}', space=sflag, size = 0x4, scoped, tag = 'scoped memory for tpu_custom_call.1']
    %12 = vsyncpa [#allocation3], 0
    // Predicated region
    $region2: #{tpu_custom_call.1} parent=1 // pred_check
      _
    $region3: #{tpu_custom_call.1} parent=1 // pred_check_branch
      %14 = sbr.rel (0) target = $region5
    $region4: #{tpu_custom_call.1} parent=1 // pred_region
      _
    $region5: #{tpu_custom_call.1} parent=1 // pred_fallthru
      _
    // Predicated region
    $region6: #{tpu_custom_call.1} parent=1 // pred_check
      _
    $region7: #{tpu_custom_call.1} parent=1 // pred_check_branch
      %16 = sbr.rel (0) target = $region9
    $region8: #{tpu_custom_call.1} parent=1 // pred_region
      _
    $region9: #{tpu_custom_call.1} parent=1 // pred_fallthru
      _
    // Predicated region
    $region10: #{tpu_custom_call.1} parent=1 // pred_check
      _
    $region11: #{tpu_custom_call.1} parent=1 // pred_check_branch
      %18 = sbr.rel (0) target = $region13
    $region12: #{tpu_custom_call.1} parent=1 // pred_region
      _
    $region13: #{tpu_custom_call.1} parent=1 // pred_fallthru
      _
    // Predicated region
    $region14: #{tpu_custom_call.1} parent=1 // pred_check
      _
    $region15: #{tpu_custom_call.1} parent=1 // pred_check_branch
      %20 = sbr.rel (0) target = $region17
    $region16: #{tpu_custom_call.1} parent=1 // pred_region
      _
    $region17: #{tpu_custom_call.1} parent=1 // pred_fallthru
      _
    // Predicated region
    $region18: #{tpu_custom_call.1} parent=1 // pred_check
      _
    $region19: #{tpu_custom_call.1} parent=1 // pred_check_branch
      %22 = sbr.rel (0) target = $region21
    $region20: #{tpu_custom_call.1} parent=1 // pred_region
      _
    $region21: #{tpu_custom_call.1} parent=1 // pred_fallthru
      _
    // Predicated region
    $region22: #{tpu_custom_call.1} parent=1 // pred_check
      _
    $region23: #{tpu_custom_call.1} parent=1 // pred_check_branch
      %24 = sbr.rel (0) target = $region25
    $region24: #{tpu_custom_call.1} parent=1 // pred_region
      _
    $region25: #{tpu_custom_call.1} parent=1 // pred_fallthru
      _
    // Predicated region
    $region26: #{tpu_custom_call.1} parent=1 // pred_check
      _
    $region27: #{tpu_custom_call.1} parent=1 // pred_check_branch
      %26 = sbr.rel (0) target = $region29
    $region28: #{tpu_custom_call.1} parent=1 // pred_region
      _
    $region29: #{tpu_custom_call.1} parent=1 // pred_fallthru
      _
    %v28 = vld [vmem:[%s0] sm:$0xff]
    %v29 = vld [vmem:[%s0 + $0x8] sm:$0xff]
    %vm30 = vcmask 261120
    %v31 = vsel %vm30, %v28, 0.0
    %32 = vadd.xlane.f32.xlu0 %v31
    %v33 = vpop.xlane.xlu0 %32
    %v34 = vsel %vm30, %v29, 0.0
    %35 = vadd.xlane.f32.xlu0 %v34
    %v36 = vpop.xlane.xlu0 %35
    %v37 = vrcp.pop 32.0
    %v38 = vmul.f32 %v33, %v37
    %v39 = vmul.f32 %v36, %v37
    %v40 = vsub.f32 %v28, %v38
    %v41 = vsub.f32 %v29, %v39
    %v42 = vmul.f32 %v40, %v40
    %v43 = vmul.f32 %v41, %v41
    %v44 = vsel %vm30, %v42, 0.0
    %45 = vadd.xlane.f32.xlu0 %v44
    %v46 = vpop.xlane.xlu0 %45
    %v47 = vsel %vm30, %v43, 0.0
    %48 = vadd.xlane.f32.xlu0 %v47
    %v49 = vpop.xlane.xlu0 %48
    %v50 = vmul.f32 %v46, 0.032258064
    %v51 = vmul.f32 %v49, 0.032258064
    %v52 = vrsqrt.pop %v50
    %v53 = vmul.f32 %v50, %v52
    %vm54 = vcmp.eq.f32.partialorder %v50, inf
    %v55 = vsel %vm54, %v50, %v53
    %vm56 = vcmp.eq.f32.partialorder %v50, 0.0
    %v57 = vand.u32 %v50, 2147483648
    %v58 = vsel %vm56, %v57, %v55
    %v59 = vrsqrt.pop %v51
    %v60 = vmul.f32 %v51, %v59
    %vm61 = vcmp.eq.f32.partialorder %v51, inf
    %v62 = vsel %vm61, %v51, %v60
    %vm63 = vcmp.eq.f32.partialorder %v51, 0.0
    %v64 = vand.u32 %v51, 2147483648
    %v65 = vsel %vm63, %v64, %v62
    %v66 = vadd.f32 %v58, 1e-06
    %v67 = vadd.f32 %v65, 1e-06
    %v68 = vrcp.pop %v66
    %v69 = vrcp.pop %v67
    %v70 = vld [vmem:[%s1] sm:$0x1]
    %v71 = vmul.f32 %v40, %v68
    %v72 = vmul.f32 %v41, %v69
    %v74 = vlaneseq
    %v75 = vshrl.u32 %v74, 7
    %v76 = vsub.s32 0, %v75
    %v77 = vrot.slane %v70, %v76
    %v79 = vmul.f32 %v77, %v71
    %v80 = vmul.f32 %v77, %v72
    %v81 = vld [vmem:[%s2] sm:$0x1]
    %v83 = vlaneseq
    %v84 = vshrl.u32 %v83, 7
    %v85 = vsub.s32 0, %v84
    %v86 = vrot.slane %v81, %v85
    %v88 = vadd.f32 %v79, %v86
    %v89 = vadd.f32 %v80, %v86
    %v90 = vpack.c.bf16 %v89, %v88
    %v91 = vld [vmem:[%s3] sm:$0xf]
    %v92 = vld [vmem:[%s3 + $0x4] sm:$0xf]
    %v93 = vld [vmem:[%s3 + $0x8] sm:$0xf]
    %v94 = vld [vmem:[%s3 + $0xc] sm:$0xf]
    %v95 = vld [vmem:[%s4] sm:$0x1]
    %v97 = vlaneseq
    %v98 = vshrl.u32 %v97, 7
    %v99 = vsub.s32 0, %v98
    %v100 = vrot.slane %v95, %v99
    %v106 = vunpack.c.l.b16 %v91
    %v107 = vunpack.c.l.b16 %v92
    %v108 = vunpack.c.l.b16 %v93
    %v109 = vunpack.c.l.b16 %v94
    %v110 = vpack.c.b16 %v107, %v106
    %v111 = vpack.c.b16 %v109, %v108
    %v115 = vsel %vm30, %v90, 0
    %117 = vmatprep.subr.bf16.mxu0 0
    %118 = vmatpush1.bf16.msra.mxu0 0
    %119 = vmatprep.subr.bf16.mxu0 0
    %120 = vmatpush1.bf16.msra.mxu0 0
    %121 = vmatprep.subr.bf16.mxu0 0
    %122 = vmatpush1.bf16.msra.mxu0 0
    %123 = vmatprep.subr.bf16.mxu0 0
    %124 = vmatpush1.bf16.msra.mxu0 0
    %125 = vmatprep.subr.bf16.mxu0 0
    %126 = vmatpush1.bf16.msra.mxu0 0
    %127 = vmatprep.subr.bf16.mxu0 0
    %128 = vmatpush1.bf16.msra.mxu0 0
    %129 = vmatprep.subr.bf16.mxu0 0
    %130 = vmatpush1.bf16.msra.mxu0 %v111
    %131 = vmatprep.subr.bf16.mxu0 0
    %132 = vmatpush1.bf16.msra.mxu0 %v110
    %133 = vmatprep.subr.bf16.mxu0 0
    %134 = vmatpush2.bf16.msra.mxu0 0
    %135 = vmatprep.subr.bf16.mxu0 0
    %136 = vmatpush2.bf16.msra.mxu0 0
    %137 = vmatprep.subr.bf16.mxu0 0
    %138 = vmatpush2.bf16.msra.mxu0 0
    %139 = vmatprep.subr.bf16.mxu0 0
    %140 = vmatpush2.bf16.msra.mxu0 0
    %141 = vmatprep.subr.bf16.mxu0 0
    %142 = vmatpush2.bf16.msra.mxu0 0
    %143 = vmatprep.subr.bf16.mxu0 0
    %144 = vmatpush2.bf16.msra.mxu0 0
    %145 = vmatprep.subr.bf16.mxu0 0
    %146 = vmatpush2.bf16.msra.mxu0 0
    %147 = vmatprep.subr.bf16.mxu0 0
    %148 = vmatpush2.bf16.msra.mxu0 0
    %149 = vmatprep.mubr.bf16.mxu0 0
    %150 = vmatmul.mubr.bf16.gmra.mxu0 %v115
    %v151 = vpop.f32.mrf.mxu0
    %v152 = vadd.f32 %v100, %v151
    %v153 = vpop.f32.mrf.mxu0
    %v154 = vpop.f32.mrf.mxu0
    %v155 = vadd.f32 %v100, %v154
    %v156 = vpop.f32.mrf.mxu0
    %157 = vdwg.mxu0
    %v158 = vmax.f32 %v152, 0.0
    %v159 = vmax.f32 %v155, 0.0
    %v160 = vpack.c.bf16 %v159, %v158
    %v161 = vld [vmem:[%s5] sm:$0xf]
    %v162 = vld [vmem:[%s5 + $0x4] sm:$0xf]
    %v163 = vld [vmem:[%s5 + $0x8] sm:$0xf]
    %v164 = vld [vmem:[%s5 + $0xc] sm:$0xf]
    %v165 = vld [vmem:[%s5 + $0x10] sm:$0xf]
    %v166 = vld [vmem:[%s5 + $0x14] sm:$0xf]
    %v167 = vld [vmem:[%s5 + $0x18] sm:$0xf]
    %v168 = vld [vmem:[%s5 + $0x1c] sm:$0xf]
    %v169 = vld [vmem:[%s6] sm:$0x1]
    %v171 = vlaneseq
    %v172 = vshrl.u32 %v171, 7
    %v173 = vsub.s32 0, %v172
    %v174 = vrot.slane %v169, %v173
    %v184 = vunpack.c.l.b16 %v161
    %v185 = vunpack.c.l.b16 %v162
    %v186 = vunpack.c.l.b16 %v163
    %v187 = vunpack.c.l.b16 %v164
    %v188 = vunpack.c.l.b16 %v165
    %v189 = vunpack.c.l.b16 %v166
    %v190 = vunpack.c.l.b16 %v167
    %v191 = vunpack.c.l.b16 %v168
    %v192 = vpack.c.b16 %v185, %v184
    %v193 = vpack.c.b16 %v187, %v186
    %v194 = vpack.c.b16 %v189, %v188
    %v195 = vpack.c.b16 %v191, %v190
    %vm200 = vcmask 523264
    %v202 = vsel %vm200, %v160, 0
    %204 = vmatprep.subr.bf16.mxu0 0
    %205 = vmatpush1.bf16.msra.mxu0 0
    %206 = vmatprep.subr.bf16.mxu0 0
    %207 = vmatpush1.bf16.msra.mxu0 0
    %208 = vmatprep.subr.bf16.mxu0 0
    %209 = vmatpush1.bf16.msra.mxu0 0
    %210 = vmatprep.subr.bf16.mxu0 0
    %211 = vmatpush1.bf16.msra.mxu0 0
    %212 = vmatprep.subr.bf16.mxu0 0
    %213 = vmatpush1.bf16.msra.mxu0 %v195
    %214 = vmatprep.subr.bf16.mxu0 0
    %215 = vmatpush1.bf16.msra.mxu0 %v194
    %216 = vmatprep.subr.bf16.mxu0 0
    %217 = vmatpush1.bf16.msra.mxu0 %v193
    %218 = vmatprep.subr.bf16.mxu0 0
    %219 = vmatpush1.bf16.msra.mxu0 %v192
    %220 = vmatprep.subr.bf16.mxu0 0
    %221 = vmatpush2.bf16.msra.mxu0 0
    %222 = vmatprep.subr.bf16.mxu0 0
    %223 = vmatpush2.bf16.msra.mxu0 0
    %224 = vmatprep.subr.bf16.mxu0 0
    %225 = vmatpush2.bf16.msra.mxu0 0
    %226 = vmatprep.subr.bf16.mxu0 0
    %227 = vmatpush2.bf16.msra.mxu0 0
    %228 = vmatprep.subr.bf16.mxu0 0
    %229 = vmatpush2.bf16.msra.mxu0 0
    %230 = vmatprep.subr.bf16.mxu0 0
    %231 = vmatpush2.bf16.msra.mxu0 0
    %232 = vmatprep.subr.bf16.mxu0 0
    %233 = vmatpush2.bf16.msra.mxu0 0
    %234 = vmatprep.subr.bf16.mxu0 0
    %235 = vmatpush2.bf16.msra.mxu0 0
    %236 = vmatprep.mubr.bf16.mxu0 0
    %237 = vmatmul.mubr.bf16.gmra.mxu0 %v202
    %v238 = vpop.f32.mrf.mxu0
    %v239 = vadd.f32 %v174, %v238
    %v240 = vpop.f32.mrf.mxu0
    %v241 = vpop.f32.mrf.mxu0
    %v242 = vadd.f32 %v174, %v241
    %v243 = vpop.f32.mrf.mxu0
    %244 = vdwg.mxu0
    %v245 = vadd.f32 %v28, %v239
    %v246 = vadd.f32 %v29, %v242
    %247 = vst.msk [vmem:[#allocation2] sm:$0xff] %vm30, %v245
    %248 = vst.msk [vmem:[#allocation2 + $0x8] sm:$0xff] %vm30, %v246
    // Predicated region
    $region30: #{tpu_custom_call.1} parent=1 // pred_check
      _
    $region31: #{tpu_custom_call.1} parent=1 // pred_check_branch
      %250 = sbr.rel (0) target = $region33
    $region32: #{tpu_custom_call.1} parent=1 // pred_region
      %s252 = ssub.s32 256, 256
      %253 = vsyncadd [#allocation3], %s252
      %s254 = sshll.u32 [#allocation2], 4
      %s255 = int_to_ptr.vmem [resolvable:$true] %s254
      %260 = dma.vmem_to_hbm [thread:$0]  %s255, 256, %s7, [#allocation3], 128, 128, 8
    $region33: #{tpu_custom_call.1} parent=1 // pred_fallthru
      _
    // Predicated region
    $region34: #{tpu_custom_call.1} parent=1 // pred_check
      _
    $region35: #{tpu_custom_call.1} parent=1 // pred_check_branch
      %262 = sbr.rel (0) target = $region37
    $region36: #{tpu_custom_call.1} parent=1 // pred_region
      %263 = dma.done [#allocation3], 256
    $region37: #{tpu_custom_call.1} parent=1 // pred_fallthru
      _
    %264 = vsyncpa [#allocation3], 1

</llo_original>
